<compile_context>
chip_gen: v7x
topology: tpu7x:2x2x1
jax: 0.10.0
libtpu: 0.0.40
codegen_flags: <defaults>
</compile_context>

<pallas_src>
import functools

import jax
import jax.numpy as jnp
from jax import lax
from jax.experimental import pallas as pl
from jax.experimental.pallas import tpu as pltpu


def _round_up(a: int, b: int) -> int:
    return (a + b - 1) // b * b


def _gather_rows(x_ref, w_ref):
    """Gather R embedding rows with a one-hot matmul on the MXU.

    x_ref: (R, 1) int32 token ids, w_ref: (Vp, Vp) f32 resident table.
    Returns ((R, Vp) f32 logits, (R, Vp) int32 column iota).
    """
    ids = x_ref[...]                                       # (R, 1) int32
    R = x_ref.shape[0]
    Vp = w_ref.shape[0]
    col = lax.broadcasted_iota(jnp.int32, (R, Vp), 1)      # (R, Vp)
    one_hot = (col == ids).astype(jnp.float32)             # (R, Vp)
    logits = jnp.dot(one_hot, w_ref[...], preferred_element_type=jnp.float32)
    return logits, col


def bigram_logits_kernel(x_ref, w_ref, logits_ref):
    """Generation path: pure batched embedding gather, no CE work."""
    logits, _ = _gather_rows(x_ref, w_ref)
    logits_ref[...] = logits.astype(logits_ref.dtype)


def bigram_loss_kernel(x_ref, y_ref, w_ref, logits_ref, loss_ref, *,
                       n_rows: int, rows_per_chunk: int):
    """Training path: batched gather + fused per-chunk cross-entropy."""
    i = pl.program_id(0)

    logits, col = _gather_rows(x_ref, w_ref)               # (R, Vp)
    logits_ref[...] = logits.astype(logits_ref.dtype)

    @pl.when(i == 0)
    def _init():
        loss_ref[...] = jnp.zeros_like(loss_ref)

    # Numerically stable batched log-sum-exp over the chunk.
    m = jnp.max(logits, axis=-1, keepdims=True)                             # (R, 1)
    lse = m + jnp.log(jnp.sum(jnp.exp(logits - m), axis=-1, keepdims=True)) # (R, 1)

    # picked[r] = logits[r, y[r]] via one batched compare (targets broadcast).
    tgt = y_ref[...]                                                        # (R, 1)
    picked = jnp.sum(jnp.where(col == tgt, logits, 0.0), axis=-1, keepdims=True)

    # Mask padded rows (row index >= n_rows) out of the reduction.
    row_idx = i * rows_per_chunk + lax.broadcasted_iota(
        jnp.int32, (rows_per_chunk, 1), 0)
    valid = (row_idx < n_rows).astype(jnp.float32)
    chunk_nll = jnp.sum((lse - picked) * valid)             # scalar

    loss_ref[...] = loss_ref[...] + chunk_nll

    @pl.when(i == pl.num_programs(0) - 1)
    def _finalize():
        loss_ref[...] = loss_ref[...] * jnp.float32(1.0 / n_rows)


def bigram_forward(x, W, y=None, *, rows_per_chunk=512):
    """Pallas implementation of BigramLanguageModel.forward.

    x: (B, T) int token ids; W: (V, V) f32 embedding table; y: (B, T) int or None.
    With y=None returns ((B, T, V) logits, None); with y returns
    ((B*T, V) logits, scalar mean cross-entropy) matching the PyTorch module.
    """
    B, T = x.shape
    V = W.shape[0]
    N = B * T

    Vp = _round_up(V, 128)                    # lane-aligned vocab
    R = min(rows_per_chunk, _round_up(N, 8))  # sublane-aligned chunk of rows
    Np = _round_up(N, R)
    num_chunks = Np // R

    # Pad W to (Vp, Vp). Padded columns get a large negative value so they never
    # win the row max and contribute exp(.) ~ 0 to the LSE; padded rows are never
    # selected (all ids < V).  (No-op when V is already a multiple of 128.)
    if Vp != V:
        W_pad = jnp.full((Vp, Vp), -1e30, dtype=jnp.float32)
        W_pad = W_pad.at[:V, :V].set(W.astype(jnp.float32))
    else:
        W_pad = W.astype(jnp.float32)

    x_flat = x.reshape(N).astype(jnp.int32)
    x_ids = jnp.zeros((Np, 1), jnp.int32).at[:N, 0].set(x_flat)

    # NOTE: W is kept fully resident in VMEM (fine for the toy vocab sizes this
    # model targets; ~V^2*4 bytes must fit the scoped VMEM limit).
    w_spec = pl.BlockSpec((Vp, Vp), lambda i: (0, 0))       # resident table
    ids_spec = pl.BlockSpec((R, 1), lambda i: (i, 0))       # (R,1) id chunk
    logits_spec = pl.BlockSpec((R, Vp), lambda i: (i, 0))   # dense (R,V) writeback

    if y is None:
        logits_pad = pl.pallas_call(
            bigram_logits_kernel,
            out_shape=jax.ShapeDtypeStruct((Np, Vp), jnp.float32),
            grid_spec=pltpu.PrefetchScalarGridSpec(
                num_scalar_prefetch=0,
                grid=(num_chunks,),
                in_specs=[ids_spec, w_spec],
                out_specs=logits_spec,
            ),
            compiler_params=pltpu.CompilerParams(
                dimension_semantics=("parallel",)),
        )(x_ids, W_pad)
        logits = logits_pad[:N, :V].reshape(B, T, V)
        return logits, None

    y_flat = y.reshape(N).astype(jnp.int32)
    y_ids = jnp.zeros((Np, 1), jnp.int32).at[:N, 0].set(y_flat)

    kernel = functools.partial(bigram_loss_kernel, n_rows=N, rows_per_chunk=R)
    logits_pad, loss = pl.pallas_call(
        kernel,
        out_shape=(
            jax.ShapeDtypeStruct((Np, Vp), jnp.float32),
            jax.ShapeDtypeStruct((1, 1), jnp.float32),
        ),
        grid_spec=pltpu.PrefetchScalarGridSpec(
            num_scalar_prefetch=0,
            grid=(num_chunks,),
            in_specs=[ids_spec, ids_spec, w_spec],
            out_specs=(
                logits_spec,
                pl.BlockSpec((1, 1), lambda i: (0, 0)),     # resident loss acc
            ),
        ),
        compiler_params=pltpu.CompilerParams(
            dimension_semantics=("arbitrary",)),            # serial CE reduction
    )(x_ids, y_ids, W_pad)

    logits = logits_pad[:N, :V]
    return logits, loss[0, 0]


def _reference_forward(x, W, y):
    # Pure-JAX reference mirroring the PyTorch module.
    logits = W[x.reshape(-1)]                               # (B*T, V)
    lse = jax.nn.logsumexp(logits, axis=-1)                 # (B*T,)
    picked = jnp.take_along_axis(logits, y.reshape(-1, 1), axis=-1)[:, 0]
    loss = jnp.mean(lse - picked)
    return logits, loss


if __name__ == "__main__":
    key = jax.random.PRNGKey(0)
    k_w, k_x, k_y = jax.random.split(key, 3)

    vocab_size = 128   # V (lane-aligned); nn.Embedding(V, V)
    B, T = 2, 8

    # nn.Embedding default init: N(0, 1)
    W = jax.random.normal(k_w, (vocab_size, vocab_size), dtype=jnp.float32)
    x = jax.random.randint(k_x, (B, T), 0, vocab_size, dtype=jnp.int32)
    y = jax.random.randint(k_y, (B, T), 0, vocab_size, dtype=jnp.int32)

    # Training-style call: (B*T, V) logits + scalar mean NLL.
    logits, loss = bigram_forward(x, W, y)
    jax.block_until_ready((logits, loss))

    ref_logits, ref_loss = _reference_forward(x, W, y)
    assert logits.shape == (B * T, vocab_size)
    assert jnp.allclose(logits, ref_logits, atol=1e-5, rtol=1e-5)
    assert jnp.allclose(loss, ref_loss, atol=1e-5, rtol=1e-5)

    # y=None (generation-style) call: (B, T, V) logits, no loss, no CE work.
    logits3, loss_none = bigram_forward(x, W, None)
    jax.block_until_ready(logits3)
    assert logits3.shape == (B, T, vocab_size) and loss_none is None
    assert jnp.allclose(logits3.reshape(B * T, vocab_size), ref_logits,
                        atol=1e-5, rtol=1e-5)

    print("KERNEL_OK")
</pallas_src>

<mosaic_0001>
module attributes {stable_mosaic.version = 11 : i64} {
  func.func @bigram_loss_kernel(%arg0: i32, %arg1: memref<16x1xi32, #tpu.memory_space<vmem>>, %arg2: memref<16x1xi32, #tpu.memory_space<vmem>>, %arg3: memref<128x128xf32, #tpu.memory_space<vmem>>, %arg4: memref<16x128xf32, #tpu.memory_space<vmem>>, %arg5: memref<1x1xf32, #tpu.memory_space<vmem>>) attributes {dimension_semantics = [#tpu.dimension_semantics<arbitrary>], iteration_bounds = array<i64: 1>, scalar_prefetch = 0 : i64, scratch_operands = 0 : i64, tpu.core_type = #tpu.core_type<tc>, window_params = [{transform_indices = @transform_0, window_bounds = array<i64: 16, 1>}, {transform_indices = @transform_1, window_bounds = array<i64: 16, 1>}, {pipeline_mode = #tpu.pipeline_mode<synchronous>, transform_indices = @transform_2, window_bounds = array<i64: 128, 128>}, {transform_indices = @transform_3, window_bounds = array<i64: 16, 128>}, {pipeline_mode = #tpu.pipeline_mode<synchronous>, transform_indices = @transform_4, window_bounds = array<i64: 1, 1>}]} {
    %c0 = arith.constant 0 : index
    %c0_0 = arith.constant 0 : index
    %0 = vector.load %arg1[%c0, %c0_0] : memref<16x1xi32, #tpu.memory_space<vmem>>, vector<16x1xi32>
    %1 = tpu.iota {dimensions = array<i32: 1>} : vector<16x128xi32>
    %2 = vector.broadcast %0 : vector<16x1xi32> to vector<16x128xi32>
    %3 = arith.cmpi eq, %1, %2 : vector<16x128xi32>
    %4 = arith.extui %3 : vector<16x128xi1> to vector<16x128xi32>
    %5 = arith.sitofp %4 : vector<16x128xi32> to vector<16x128xf32>
    %c0_1 = arith.constant 0 : index
    %c0_2 = arith.constant 0 : index
    %6 = vector.load %arg3[%c0_1, %c0_2] : memref<128x128xf32, #tpu.memory_space<vmem>>, vector<128x128xf32>
    %cst = arith.constant dense<0.000000e+00> : vector<16x128xf32>
    %7 = tpu.matmul %5, %6, %cst {dimension_numbers = #tpu.dot_dimension_numbers<[1], [0], [0], [1], [0, 0, 1, 1], [], []>} : vector<16x128xf32>, vector<128x128xf32>, vector<16x128xf32> -> vector<16x128xf32>
    %c0_3 = arith.constant 0 : index
    %c0_4 = arith.constant 0 : index
    %8 = vector.load %arg4[%c0_3, %c0_4] : memref<16x128xf32, #tpu.memory_space<vmem>>, vector<16x128xf32>
    tpu.vector_store %arg4[%c0_3, %c0_4], %7 {strides = array<i32>} : memref<16x128xf32, #tpu.memory_space<vmem>>, vector<16x128xf32>,
    %c0_i32 = arith.constant 0 : i32
    %9 = arith.cmpi eq, %arg0, %c0_i32 : i32
    %10 = arith.extui %9 : i1 to i32
    %c0_i32_5 = arith.constant 0 : i32
    %11 = arith.cmpi ne, %10, %c0_i32_5 : i32
    scf.if %11 {
      %cst_20 = arith.constant 0.000000e+00 : f32
      %49 = vector.broadcast %cst_20 : f32 to vector<1x1xf32>
      %c0_21 = arith.constant 0 : index
      %c0_22 = arith.constant 0 : index
      %50 = vector.load %arg5[%c0_21, %c0_22] : memref<1x1xf32, #tpu.memory_space<vmem>>, vector<1x1xf32>
      tpu.vector_store %arg5[%c0_21, %c0_22], %49 {strides = array<i32>} : memref<1x1xf32, #tpu.memory_space<vmem>>, vector<1x1xf32>,
    } else {
    }
    %cst_6 = arith.constant dense<0xFF800000> : vector<16xf32>
    %12 = vector.multi_reduction <maximumf>, %7, %cst_6 [1] : vector<16x128xf32> to vector<16xf32>
    %13 = vector.shape_cast %12 : vector<16xf32> to vector<16x1xf32>
    %14 = vector.broadcast %13 : vector<16x1xf32> to vector<16x128xf32>
    %15 = arith.subf %7, %14 : vector<16x128xf32>
    %16 = math.exp %15 : vector<16x128xf32>
    %cst_7 = arith.constant dense<0.000000e+00> : vector<16xf32>
    %17 = vector.multi_reduction <add>, %16, %cst_7 [1] : vector<16x128xf32> to vector<16xf32>
    %18 = vector.shape_cast %17 : vector<16xf32> to vector<16x1xf32>
    %19 = math.log %18 : vector<16x1xf32>
    %20 = arith.addf %13, %19 : vector<16x1xf32>
    %c0_8 = arith.constant 0 : index
    %c0_9 = arith.constant 0 : index
    %21 = vector.load %arg2[%c0_8, %c0_9] : memref<16x1xi32, #tpu.memory_space<vmem>>, vector<16x1xi32>
    %22 = vector.broadcast %21 : vector<16x1xi32> to vector<16x128xi32>
    %23 = arith.cmpi eq, %1, %22 : vector<16x128xi32>
    %cst_10 = arith.constant 0.000000e+00 : f32
    %24 = vector.broadcast %cst_10 : f32 to vector<16x128xf32>
    %25 = arith.select %23, %7, %24 : vector<16x128xi1>, vector<16x128xf32>
    %cst_11 = arith.constant dense<0.000000e+00> : vector<16xf32>
    %26 = vector.multi_reduction <add>, %25, %cst_11 [1] : vector<16x128xf32> to vector<16xf32>
    %27 = vector.shape_cast %26 : vector<16xf32> to vector<16x1xf32>
    %c16_i32 = arith.constant 16 : i32
    %28 = arith.muli %arg0, %c16_i32 : i32
    %29 = tpu.iota {dimensions = array<i32: 0>} : vector<16x1xi32>
    %30 = vector.broadcast %28 : i32 to vector<16x1xi32>
    %31 = arith.addi %30, %29 : vector<16x1xi32>
    %c16_i32_12 = arith.constant 16 : i32
    %32 = vector.broadcast %c16_i32_12 : i32 to vector<16x1xi32>
    %33 = arith.cmpi slt, %31, %32 : vector<16x1xi32>
    %34 = arith.extui %33 : vector<16x1xi1> to vector<16x1xi32>
    %35 = arith.sitofp %34 : vector<16x1xi32> to vector<16x1xf32>
    %36 = arith.subf %20, %27 : vector<16x1xf32>
    %37 = arith.mulf %36, %35 : vector<16x1xf32>
    %38 = vector.shape_cast %37 : vector<16x1xf32> to vector<1x16x1xf32>
    %cst_13 = arith.constant dense<0.000000e+00> : vector<1xf32>
    %39 = vector.multi_reduction <add>, %38, %cst_13 [1, 2] : vector<1x16x1xf32> to vector<1xf32>
    %40 = vector.shape_cast %39 : vector<1xf32> to vector<1x1x1xf32>
    %41 = vector.extract %40[0, 0, 0] : f32 from vector<1x1x1xf32>
    %c0_14 = arith.constant 0 : index
    %c0_15 = arith.constant 0 : index
    %42 = vector.load %arg5[%c0_14, %c0_15] : memref<1x1xf32, #tpu.memory_space<vmem>>, vector<1x1xf32>
    %43 = vector.broadcast %41 : f32 to vector<1x1xf32>
    %44 = arith.addf %42, %43 : vector<1x1xf32>
    %c0_16 = arith.constant 0 : index
    %c0_17 = arith.constant 0 : index
    %45 = vector.load %arg5[%c0_16, %c0_17] : memref<1x1xf32, #tpu.memory_space<vmem>>, vector<1x1xf32>
    tpu.vector_store %arg5[%c0_16, %c0_17], %44 {strides = array<i32>} : memref<1x1xf32, #tpu.memory_space<vmem>>, vector<1x1xf32>,
    %c0_i32_18 = arith.constant 0 : i32
    %46 = arith.cmpi eq, %arg0, %c0_i32_18 : i32
    %47 = arith.extui %46 : i1 to i32
    %c0_i32_19 = arith.constant 0 : i32
    %48 = arith.cmpi ne, %47, %c0_i32_19 : i32
    scf.if %48 {
      %c0_20 = arith.constant 0 : index
      %c0_21 = arith.constant 0 : index
      %49 = vector.load %arg5[%c0_20, %c0_21] : memref<1x1xf32, #tpu.memory_space<vmem>>, vector<1x1xf32>
      %cst_22 = arith.constant 6.250000e-02 : f32
      %50 = vector.broadcast %cst_22 : f32 to vector<1x1xf32>
      %51 = arith.mulf %49, %50 : vector<1x1xf32>
      %c0_23 = arith.constant 0 : index
      %c0_24 = arith.constant 0 : index
      %52 = vector.load %arg5[%c0_23, %c0_24] : memref<1x1xf32, #tpu.memory_space<vmem>>, vector<1x1xf32>
      tpu.vector_store %arg5[%c0_23, %c0_24], %51 {strides = array<i32>} : memref<1x1xf32, #tpu.memory_space<vmem>>, vector<1x1xf32>,
    } else {
    }
    return
  }
  func.func @transform_0(%arg0: i32) -> (i32, i32) {
    %c0_i32 = arith.constant 0 : i32
    %c0_i32_0 = arith.constant 0 : i32
    return %arg0, %c0_i32 : i32, i32
  }
  func.func @transform_1(%arg0: i32) -> (i32, i32) {
    %c0_i32 = arith.constant 0 : i32
    %c0_i32_0 = arith.constant 0 : i32
    return %arg0, %c0_i32 : i32, i32
  }
  func.func @transform_2(%arg0: i32) -> (i32, i32) {
    %c0_i32 = arith.constant 0 : i32
    %c0_i32_0 = arith.constant 0 : i32
    %c0_i32_1 = arith.constant 0 : i32
    return %c0_i32, %c0_i32_0 : i32, i32
  }
  func.func @transform_3(%arg0: i32) -> (i32, i32) {
    %c0_i32 = arith.constant 0 : i32
    %c0_i32_0 = arith.constant 0 : i32
    return %arg0, %c0_i32 : i32, i32
  }
  func.func @transform_4(%arg0: i32) -> (i32, i32) {
    %c0_i32 = arith.constant 0 : i32
    %c0_i32_0 = arith.constant 0 : i32
    %c0_i32_1 = arith.constant 0 : i32
    return %c0_i32, %c0_i32_0 : i32, i32
  }
}

</mosaic_0001>

<llo_original>
// kernel: tpu_custom_call.1
$region0: #{tpu_custom_call.1}
  #allocation0 [shape = 'u32[]', space=smem, size = 0x4, offset = 0x4, fixed_abs, tag = 'smem constant byte address 0x4 - core index']
  #allocation1 [shape = 'u32[144,128]{1,0:T(1,128)}', space=vmem, size = 0x12000, scoped, tag = 'internal scratch']
  %s0 = inlined_call_operand.vmem [shape: s32[16,1], index: 0, kind: input, shape index: {}]
  %s1 = inlined_call_operand.vmem [shape: s32[16,1], index: 1, kind: input, shape index: {}]
  %s2 = inlined_call_operand.hbm [shape: f32[128,128], index: 2, kind: input, shape index: {}]
  %s3 = inlined_call_operand.hbm [shape: f32[16,128], index: 3, kind: output, shape index: {0}]
  %s4 = inlined_call_operand.hbm [shape: f32[1,1], index: 4, kind: output, shape index: {1}]
  %5 = xla_tuple %s3, %s4
  %s6 = sld [smem:[#allocation0]]
  $region42: #{tpu_custom_call.1} parent=0
    _
  %s8 = ssub.s32 1, %s6
  %s9 = scalar_select 0, %s8, %s6
  $region1: #{tpu_custom_call.1} parent=0
    #allocation2 [shape = 'u8[65536]{0}', space=vmem, size = 0x10000, scoped, tag = 'input window, operand 2, single buffered']
    #allocation3 [shape = 's32[1]{0}', space=sflag, size = 0x4, scoped, tag = 'scoped memory for tpu_custom_call.1']
    #allocation4 [shape = 's32[1]{0}', space=sflag, size = 0x4, scoped, tag = 'scoped memory for tpu_custom_call.1']
    #allocation5 [shape = 'u8[8192]{0}', space=vmem, size = 0x2000, scoped, tag = 'output window, operand 0, single buffered']
    #allocation6 [shape = 'u8[512]{0}', space=vmem, size = 0x400, scoped, tag = 'output window, operand 1, single buffered']
    #allocation7 [shape = 's32[1]{0}', space=sflag, size = 0x4, scoped, tag = 'scoped memory for tpu_custom_call.1']
    %10 = vsyncpa [#allocation3], 0
    %11 = vsyncpa [#allocation4], 0
    %12 = vsyncpa [#allocation7], 0
    // Predicated region
    $region2: #{tpu_custom_call.1} parent=1 // pred_check
      _
    $region3: #{tpu_custom_call.1} parent=1 // pred_check_branch
      %14 = sbr.rel (0) target = $region5
    $region4: #{tpu_custom_call.1} parent=1 // pred_region
      _
    $region5: #{tpu_custom_call.1} parent=1 // pred_fallthru
      _
    // Predicated region
    $region6: #{tpu_custom_call.1} parent=1 // pred_check
      _
    $region7: #{tpu_custom_call.1} parent=1 // pred_check_branch
      %16 = sbr.rel (0) target = $region9
    $region8: #{tpu_custom_call.1} parent=1 // pred_region
      _
    $region9: #{tpu_custom_call.1} parent=1 // pred_fallthru
      _
    // Predicated region
    $region10: #{tpu_custom_call.1} parent=1 // pred_check
      _
    $region11: #{tpu_custom_call.1} parent=1 // pred_check_branch
      %18 = sbr.rel (0) target = $region13
    $region12: #{tpu_custom_call.1} parent=1 // pred_region
      %s20 = ssub.s32 2048, 2048
      %21 = vsyncadd [#allocation3], %s20
      %s22 = sshll.u32 [#allocation2], 4
      %s23 = int_to_ptr.vmem [resolvable:$true] %s22
      %28 = dma.hbm_to_vmem [thread:$0]  %s2, 2048, %s23, [#allocation3], 128, 128, 8
    $region13: #{tpu_custom_call.1} parent=1 // pred_fallthru
      _
    // Predicated region
    $region14: #{tpu_custom_call.1} parent=1 // pred_check
      _
    $region15: #{tpu_custom_call.1} parent=1 // pred_check_branch
      %30 = sbr.rel (0) target = $region17
    $region16: #{tpu_custom_call.1} parent=1 // pred_region
      %31 = dma.done [#allocation3], 2048
    $region17: #{tpu_custom_call.1} parent=1 // pred_fallthru
      _
    %v32 = vld [vmem:[%s0] sm:$0xff]
    %v33 = vld [vmem:[%s0 + $0x8] sm:$0xff]
    %v34 = vlaneseq
    %v35 = vand.u32 %v34, 127
    %36 = vset.pattern.permute.xlu0 0
    %37 = vperm.xlu0 %36, %v32
    %v38 = vpop.permute.xlu0 %37
    %39 = vset.pattern.permute.xlu0 0
    %40 = vperm.xlu0 %39, %v33
    %v41 = vpop.permute.xlu0 %40
    %vm42 = vcmp.eq.s32.totalorder %v35, %v38
    %vm43 = vcmp.eq.s32.totalorder %v35, %v41
    %v44 = vsel %vm42, 1, 0
    %v45 = vsel %vm43, 1, 0
    %v46 = vcvt.s32.f32 %v44
    %v47 = vcvt.s32.f32 %v45
    %v48 = vld [vmem:[#allocation2] sm:$0xff]
    %v49 = vld [vmem:[#allocation2 + $0x8] sm:$0xff]
    %v50 = vld [vmem:[#allocation2 + $0x10] sm:$0xff]
    %v51 = vld [vmem:[#allocation2 + $0x18] sm:$0xff]
    %v52 = vld [vmem:[#allocation2 + $0x20] sm:$0xff]
    %v53 = vld [vmem:[#allocation2 + $0x28] sm:$0xff]
    %v54 = vld [vmem:[#allocation2 + $0x30] sm:$0xff]
    %v55 = vld [vmem:[#allocation2 + $0x38] sm:$0xff]
    %v56 = vld [vmem:[#allocation2 + $0x40] sm:$0xff]
    %v57 = vld [vmem:[#allocation2 + $0x48] sm:$0xff]
    %v58 = vld [vmem:[#allocation2 + $0x50] sm:$0xff]
    %v59 = vld [vmem:[#allocation2 + $0x58] sm:$0xff]
    %v60 = vld [vmem:[#allocation2 + $0x60] sm:$0xff]
    %v61 = vld [vmem:[#allocation2 + $0x68] sm:$0xff]
    %v62 = vld [vmem:[#allocation2 + $0x70] sm:$0xff]
    %v63 = vld [vmem:[#allocation2 + $0x78] sm:$0xff]
    %64 = vmatprep.subr.mxu0 0.0
    %65 = vmatpush1.msra.mxu0 %v48
    %66 = vmatprep.subr.mxu0 0.0
    %67 = vmatpush1.msra.mxu0 %v49
    %68 = vmatprep.subr.mxu0 0.0
    %69 = vmatpush1.msra.mxu0 %v50
    %70 = vmatprep.subr.mxu0 0.0
    %71 = vmatpush1.msra.mxu0 %v51
    %72 = vmatprep.subr.mxu0 0.0
    %73 = vmatpush1.msra.mxu0 %v52
    %74 = vmatprep.subr.mxu0 0.0
    %75 = vmatpush1.msra.mxu0 %v53
    %76 = vmatprep.subr.mxu0 0.0
    %77 = vmatpush1.msra.mxu0 %v54
    %78 = vmatprep.subr.mxu0 0.0
    %79 = vmatpush1.msra.mxu0 %v55
    %80 = vmatprep.subr.mxu0 0.0
    %81 = vmatpush1.msra.mxu0 %v56
    %82 = vmatprep.subr.mxu0 0.0
    %83 = vmatpush1.msra.mxu0 %v57
    %84 = vmatprep.subr.mxu0 0.0
    %85 = vmatpush1.msra.mxu0 %v58
    %86 = vmatprep.subr.mxu0 0.0
    %87 = vmatpush1.msra.mxu0 %v59
    %88 = vmatprep.subr.mxu0 0.0
    %89 = vmatpush1.msra.mxu0 %v60
    %90 = vmatprep.subr.mxu0 0.0
    %91 = vmatpush1.msra.mxu0 %v61
    %92 = vmatprep.subr.mxu0 0.0
    %93 = vmatpush1.msra.mxu0 %v62
    %94 = vmatprep.subr.mxu0 0.0
    %95 = vmatpush1.msra.mxu0 %v63
    %96 = vmatprep.subr.mxu0 0.0
    %97 = vmatpush1.msra.mxu0 0.0
    %98 = vmatprep.subr.mxu0 0.0
    %99 = vmatpush1.msra.mxu0 0.0
    %100 = vmatprep.subr.mxu0 0.0
    %101 = vmatpush1.msra.mxu0 0.0
    %102 = vmatprep.subr.mxu0 0.0
    %103 = vmatpush1.msra.mxu0 0.0
    %104 = vmatprep.subr.mxu0 0.0
    %105 = vmatpush1.msra.mxu0 0.0
    %106 = vmatprep.subr.mxu0 0.0
    %107 = vmatpush1.msra.mxu0 0.0
    %108 = vmatprep.subr.mxu0 0.0
    %109 = vmatpush1.msra.mxu0 0.0
    %110 = vmatprep.subr.mxu0 0.0
    %111 = vmatpush1.msra.mxu0 0.0
    %112 = vmatprep.subr.mxu0 0.0
    %113 = vmatpush1.msra.mxu0 0.0
    %114 = vmatprep.subr.mxu0 0.0
    %115 = vmatpush1.msra.mxu0 0.0
    %116 = vmatprep.subr.mxu0 0.0
    %117 = vmatpush1.msra.mxu0 0.0
    %118 = vmatprep.subr.mxu0 0.0
    %119 = vmatpush1.msra.mxu0 0.0
    %120 = vmatprep.subr.mxu0 0.0
    %121 = vmatpush1.msra.mxu0 0.0
    %122 = vmatprep.subr.mxu0 0.0
    %123 = vmatpush1.msra.mxu0 0.0
    %124 = vmatprep.subr.mxu0 0.0
    %125 = vmatpush1.msra.mxu0 0.0
    %126 = vmatprep.subr.mxu0 0.0
    %127 = vmatpush1.msra.mxu0 0.0
    %128 = vmatprep.mubr.f32.mxu0 0.0
    %129 = vmatmul.mubr.f32.gmra.mrb[0].mxu0 %v46
    %v130 = vpop.f32.mrb[0].mxu0
    %v131 = vadd.f32 0.0, %v130
    %v132 = vpop.f32.mrb[0].mxu0
    %133 = vmatprep.mubr.f32.mxu0 0.0
    %134 = vmatmul.mubr.f32.gmra.mrb[0].mxu0 %v47
    %v135 = vpop.f32.mrb[0].mxu0
    %v136 = vadd.f32 0.0, %v135
    %v137 = vpop.f32.mrb[0].mxu0
    %138 = vdwg.mxu0
    %139 = vst [vmem:[#allocation5] sm:$0xff] %v131
    %140 = vst [vmem:[#allocation5 + $0x8] sm:$0xff] %v136
    %p141 = scmp.eq.s32.totalorder 0, 0
    // Predicated region
    $region18: #{tpu_custom_call.1} parent=1 // pred_check
      %p142 = pneg %p141
    $region19: #{tpu_custom_call.1} parent=1 // pred_check_branch
      %144 = sbr.rel (%p142) target = $region21
    $region20: #{tpu_custom_call.1} parent=1 // pred_region
      %vm145 = vcmask 0
      %146 = vst.msk [vmem:[#allocation6] sm:$0x1] %vm145, 0.0
    $region21: #{tpu_custom_call.1} parent=1 // pred_fallthru
      _
    %147 = vmax.xlane.f32.xlu0 %v131
    %v148 = vpop.xlane.xlu0 %147
    %149 = vmax.xlane.f32.xlu0 %v136
    %v150 = vpop.xlane.xlu0 %149
    %v151 = vsub.f32 %v131, %v148
    %v152 = vsub.f32 %v136, %v150
    %v153 = vmul.f32 %v151, 1.442695
    %v154 = vpow.pop %v153
    %v155 = vmul.f32 %v152, 1.442695
    %v156 = vpow.pop %v155
    %157 = vadd.xlane.f32.xlu0 %v154
    %v158 = vpop.xlane.xlu0 %157
    %159 = vadd.xlane.f32.xlu0 %v156
    %v160 = vpop.xlane.xlu0 %159
    %v161 = vlog2.pop %v158
    %v162 = vmul.f32 %v161, 0.6931472
    %v163 = vlog2.pop %v160
    %v164 = vmul.f32 %v163, 0.6931472
    %v165 = vadd.f32 %v148, %v162
    %v166 = vadd.f32 %v150, %v164
    %v167 = vld [vmem:[%s1] sm:$0xff]
    %v168 = vld [vmem:[%s1 + $0x8] sm:$0xff]
    %169 = vset.pattern.permute.xlu0 0
    %170 = vperm.xlu0 %169, %v167
    %v171 = vpop.permute.xlu0 %170
    %172 = vset.pattern.permute.xlu0 0
    %173 = vperm.xlu0 %172, %v168
    %v174 = vpop.permute.xlu0 %173
    %vm175 = vcmp.eq.s32.totalorder %v35, %v171
    %vm176 = vcmp.eq.s32.totalorder %v35, %v174
    %v177 = vsel %vm175, %v131, 0.0
    %v178 = vsel %vm176, %v136, 0.0
    %179 = vadd.xlane.f32.xlu0 %v177
    %v180 = vpop.xlane.xlu0 %179
    %181 = vadd.xlane.f32.xlu0 %v178
    %v182 = vpop.xlane.xlu0 %181
    %s183 = smul.u32 0, 16
    %v184 = vlaneseq
    %v185 = vshrl.u32 %v184, 7
    %v186 = vadd.s32 %v185, 8
    %v187 = vstv %s183
    %v188 = vadd.s32 %v187, %v185
    %v189 = vadd.s32 %v187, %v186
    %vm190 = vcmp.lt.s32.totalorder %v188, 16
    %vm191 = vcmp.lt.s32.totalorder %v189, 16
    %v192 = vsel %vm190, 1, 0
    %v193 = vsel %vm191, 1, 0
    %v194 = vcvt.s32.f32 %v192
    %v195 = vcvt.s32.f32 %v193
    %v196 = vsub.f32 %v165, %v180
    %v197 = vsub.f32 %v166, %v182
    %v198 = vmul.f32 %v196, %v194
    %v199 = vmul.f32 %v197, %v195
    %vm200 = vcmask 7168
    %v201 = vsel %vm200, %v198, 0.0
    %v202 = vsel %vm200, %v199, 0.0
    %v203 = vadd.f32 %v201, %v202
    %204 = vadd.xlane.f32.xlu0 %v203
    %v205 = vpop.xlane.xlu0 %204
    %v206 = vrot.slane %v205, 4
    %v207 = vadd.f32 %v205, %v206
    %v208 = vrot.slane %v207, 2
    %v209 = vadd.f32 %v207, %v208
    %v210 = vrot.slane %v209, 1
    %v211 = vadd.f32 %v209, %v210
    %s212 = vtos %v211
    %v213 = vld [vmem:[#allocation6] sm:$0x1]
    %v214 = vstv %s212
    %v215 = vadd.f32 %v213, %v214
    %vm216 = vcmask 0
    %217 = vst.msk [vmem:[#allocation6] sm:$0x1] %vm216, %v215
    // Predicated region
    $region22: #{tpu_custom_call.1} parent=1 // pred_check
      %p218 = pneg %p141
    $region23: #{tpu_custom_call.1} parent=1 // pred_check_branch
      %220 = sbr.rel (%p218) target = $region25
    $region24: #{tpu_custom_call.1} parent=1 // pred_region
      %v221 = vld [vmem:[#allocation6] sm:$0x1]
      %v222 = vmul.f32 %v221, 0.0625
      %223 = vst.msk [vmem:[#allocation6] sm:$0x1] %vm216, %v222
    $region25: #{tpu_custom_call.1} parent=1 // pred_fallthru
      _
    // Predicated region
    $region26: #{tpu_custom_call.1} parent=1 // pred_check
      _
    $region27: #{tpu_custom_call.1} parent=1 // pred_check_branch
      %225 = sbr.rel (0) target = $region29
    $region28: #{tpu_custom_call.1} parent=1 // pred_region
      %s227 = ssub.s32 256, 256
      %228 = vsyncadd [#allocation4], %s227
      %s229 = sshll.u32 [#allocation5], 4
      %s230 = int_to_ptr.vmem [resolvable:$true] %s229
      %235 = dma.vmem_to_hbm [thread:$0]  %s230, 256, %s3, [#allocation4], 128, 128, 8
    $region29: #{tpu_custom_call.1} parent=1 // pred_fallthru
      _
    // Predicated region
    $region30: #{tpu_custom_call.1} parent=1 // pred_check
      _
    $region31: #{tpu_custom_call.1} parent=1 // pred_check_branch
      %237 = sbr.rel (0) target = $region33
    $region32: #{tpu_custom_call.1} parent=1 // pred_region
      %s239 = ssub.s32 16, 16
      %240 = vsyncadd [#allocation7], %s239
      %s242 = sshll.u32 [#allocation6], 4
      %s243 = int_to_ptr.vmem [resolvable:$true] %s242
      %245 = dma.vmem_to_hbm [thread:$0]  %s243, 16, %s4, [#allocation7]
    $region33: #{tpu_custom_call.1} parent=1 // pred_fallthru
      _
    // Predicated region
    $region34: #{tpu_custom_call.1} parent=1 // pred_check
      _
    $region35: #{tpu_custom_call.1} parent=1 // pred_check_branch
      %247 = sbr.rel (0) target = $region37
    $region36: #{tpu_custom_call.1} parent=1 // pred_region
      %248 = dma.done [#allocation4], 256
    $region37: #{tpu_custom_call.1} parent=1 // pred_fallthru
      _
    // Predicated region
    $region38: #{tpu_custom_call.1} parent=1 // pred_check
      _
    $region39: #{tpu_custom_call.1} parent=1 // pred_check_branch
      %250 = sbr.rel (0) target = $region41
    $region40: #{tpu_custom_call.1} parent=1 // pred_region
      %251 = dma.done [#allocation7], 16
    $region41: #{tpu_custom_call.1} parent=1 // pred_fallthru
      _
    %252 = vsyncpa [#allocation3], 1
    %253 = vsyncpa [#allocation4], 1
    %254 = vsyncpa [#allocation7], 1

</llo_original>
